<compile_context>
chip_gen: v7x
topology: tpu7x:2x2x1
jax: 0.10.0
libtpu: 0.0.40
codegen_flags: <defaults>
</compile_context>

<pallas_src>
import jax
import jax.numpy as jnp
from jax.experimental import pallas as pl
from jax.experimental.pallas import tpu as pltpu

NEG_SLOPE = 0.01     # nn.LeakyReLU default
BN_EPS = 1e-5        # nn.BatchNorm1d default eps


def _round_up(x, m):
    return ((x + m - 1) // m) * m


def encoder_kernel(x_ref, w1_ref, b1_ref, w2_ref, b2_ref, w3_ref, b3_ref, o_ref):
    """One batch tile: (BT, D) -> (BT, LAT).  BN already folded into w1/b1, w2/b2."""
    wdt = w1_ref.dtype  # compute dtype for MXU inputs (f32 or bf16)

    h1 = jnp.dot(x_ref[...], w1_ref[...], preferred_element_type=jnp.float32)
    h1 = h1 + b1_ref[...]                              # (1, H1) broadcasts; f32
    h1 = jnp.maximum(h1, NEG_SLOPE * h1)               # LeakyReLU (slope < 1)

    h2 = jnp.dot(h1.astype(wdt), w2_ref[...], preferred_element_type=jnp.float32)
    h2 = h2 + b2_ref[...]
    h2 = jnp.maximum(h2, NEG_SLOPE * h2)               # LeakyReLU

    o = jnp.dot(h2.astype(wdt), w3_ref[...], preferred_element_type=jnp.float32)
    o_ref[...] = (o + b3_ref[...]).astype(o_ref.dtype)


def encoder_forward(x, params, *, b_tile=8192, min_tiles=4,
                    compute_dtype=jnp.float32):
    """x: (N, D).  params: PyTorch-shaped Linear / BatchNorm tensors.

    Returns (x_star, y_star) exactly like Encoder.forward (eval-mode BN).
    """
    (w1, b1, g1, be1, m1, v1,
     w2, b2, g2, be2, m2, v2,
     w3, b3) = params

    N, D = x.shape
    H1 = w1.shape[0]          # 2*D
    H2 = w2.shape[0]          # D
    LAT = w3.shape[0]         # latent size

    # ---- fold eval-mode BatchNorm into the preceding Linear (exact affine) ----
    s1 = g1 / jnp.sqrt(v1 + BN_EPS)                        # (H1,)
    w1f = (w1.T * s1[None, :]).astype(compute_dtype)       # (D, H1)
    b1f = (s1 * (b1 - m1) + be1).reshape(1, H1).astype(jnp.float32)

    s2 = g2 / jnp.sqrt(v2 + BN_EPS)                        # (H2,)
    w2f = (w2.T * s2[None, :]).astype(compute_dtype)       # (H1, H2)
    b2f = (s2 * (b2 - m2) + be2).reshape(1, H2).astype(jnp.float32)

    w3f = w3.T.astype(compute_dtype)                       # (H2, LAT)
    b3f = b3.reshape(1, LAT).astype(jnp.float32)

    # Input in compute dtype (no-op for the default f32 path — no extra copy).
    x_c = x.astype(compute_dtype)

    # ---- batch tiling ----------------------------------------------------------
    # Multiple of 8 (sublane), big enough to amortize per-step overhead, capped so
    # the grid keeps >= min_tiles tiles (v7x megacore gets both cores busy).
    bt = _round_up(min(b_tile, max(pl.cdiv(N, min_tiles), 8)), 8)
    bt = min(bt, _round_up(N, 8))
    grid = (pl.cdiv(N, bt),)   # ragged tail tile handled by Pallas masking — no pad

    out = pl.pallas_call(
        encoder_kernel,
        out_shape=jax.ShapeDtypeStruct((N, LAT), jnp.float32),
        grid_spec=pltpu.PrefetchScalarGridSpec(
            num_scalar_prefetch=0,
            grid=grid,
            in_specs=[
                pl.BlockSpec((bt, D), lambda i: (i, 0)),      # x tile
                pl.BlockSpec((D, H1), lambda i: (0, 0)),      # w1 (BN folded)
                pl.BlockSpec((1, H1), lambda i: (0, 0)),      # b1 (BN folded)
                pl.BlockSpec((H1, H2), lambda i: (0, 0)),     # w2 (BN folded)
                pl.BlockSpec((1, H2), lambda i: (0, 0)),      # b2 (BN folded)
                pl.BlockSpec((H2, LAT), lambda i: (0, 0)),    # w3
                pl.BlockSpec((1, LAT), lambda i: (0, 0)),     # b3
            ],
            out_specs=pl.BlockSpec((bt, LAT), lambda i: (i, 0)),
        ),
        compiler_params=pltpu.CompilerParams(
            dimension_semantics=("parallel",)),               # batch tiles independent
    )(x_c, w1f, b1f, w2f, b2f, w3f, b3f)

    half = LAT // 2
    y_star = out[:half]          # x[:letent_size // 2]
    x_star = out[half:]          # x[letent_size // 2:]
    return x_star, y_star


def ref_forward(x, params):
    """Pure-JAX reference matching the PyTorch Encoder (eval-mode BN)."""
    (w1, b1, g1, be1, m1, v1,
     w2, b2, g2, be2, m2, v2,
     w3, b3) = params

    lrelu = lambda v: jnp.where(v > 0, v, NEG_SLOPE * v)
    bn = lambda v, g, b, m, var: g * (v - m) / jnp.sqrt(var + BN_EPS) + b

    h = lrelu(bn(x @ w1.T + b1, g1, be1, m1, v1))
    h = lrelu(bn(h @ w2.T + b2, g2, be2, m2, v2))
    o = h @ w3.T + b3
    lat = w3.shape[0]
    return o[lat // 2:], o[:lat // 2]


if __name__ == "__main__":
    key = jax.random.PRNGKey(0)

    # Small shapes consistent with the module: x_in_size=32 -> hidden 64/32, latent 16.
    D = 32
    H1 = 2 * D
    H2 = D
    LAT = D // 2
    if LAT % 2 != 0:
        LAT += 1
    N = 40                       # batch (> latent//2 so both output slices are non-trivial,
                                 # and NOT a multiple of the tile, to exercise the ragged tail)

    ks = jax.random.split(key, 15)

    def rnd(k, shape, scale=1.0):
        return scale * jax.random.normal(k, shape, jnp.float32)

    # PyTorch-shaped parameters: Linear.weight is (out, in); BN has gamma/beta/mean/var.
    w1 = rnd(ks[0], (H1, D), 1.0 / float(jnp.sqrt(D)))
    b1 = rnd(ks[1], (H1,), 0.1)
    g1 = 1.0 + 0.1 * rnd(ks[2], (H1,))
    be1 = 0.1 * rnd(ks[3], (H1,))
    m1 = 0.1 * rnd(ks[4], (H1,))
    v1 = jnp.abs(rnd(ks[5], (H1,))) + 0.5

    w2 = rnd(ks[6], (H2, H1), 1.0 / float(jnp.sqrt(H1)))
    b2 = rnd(ks[7], (H2,), 0.1)
    g2 = 1.0 + 0.1 * rnd(ks[8], (H2,))
    be2 = 0.1 * rnd(ks[9], (H2,))
    m2 = 0.1 * rnd(ks[10], (H2,))
    v2 = jnp.abs(rnd(ks[11], (H2,))) + 0.5

    w3 = rnd(ks[12], (LAT, H2), 1.0 / float(jnp.sqrt(H2)))
    b3 = rnd(ks[13], (LAT,), 0.1)

    params = (w1, b1, g1, be1, m1, v1, w2, b2, g2, be2, m2, v2, w3, b3)

    x = rnd(ks[14], (N, D))

    # ---- default f32 path (exact parity with the PyTorch module) ----
    x_star, y_star = encoder_forward(x, params)
    x_star = jax.block_until_ready(x_star)
    y_star = jax.block_until_ready(y_star)

    assert y_star.shape == (LAT // 2, LAT), y_star.shape
    assert x_star.shape == (N - LAT // 2, LAT), x_star.shape

    x_ref, y_ref = ref_forward(x, params)
    assert jnp.allclose(x_star, x_ref, rtol=1e-4, atol=1e-4), \
        float(jnp.max(jnp.abs(x_star - x_ref)))
    assert jnp.allclose(y_star, y_ref, rtol=1e-4, atol=1e-4), \
        float(jnp.max(jnp.abs(y_star - y_ref)))

    # ---- optional bf16 compute path (bandwidth-optimized), looser tolerance ----
    x_star_b, y_star_b = encoder_forward(x, params, compute_dtype=jnp.bfloat16)
    x_star_b = jax.block_until_ready(x_star_b)
    y_star_b = jax.block_until_ready(y_star_b)
    assert jnp.allclose(x_star_b, x_ref, rtol=5e-2, atol=5e-2), \
        float(jnp.max(jnp.abs(x_star_b - x_ref)))
    assert jnp.allclose(y_star_b, y_ref, rtol=5e-2, atol=5e-2), \
        float(jnp.max(jnp.abs(y_star_b - y_ref)))

    print("KERNEL_OK")
</pallas_src>

<mosaic_0001>
module attributes {stable_mosaic.version = 11 : i64} {
  func.func @encoder_kernel(%arg0: i32, %arg1: memref<16x32xf32, #tpu.memory_space<vmem>>, %arg2: memref<32x64xf32, #tpu.memory_space<vmem>>, %arg3: memref<1x64xf32, #tpu.memory_space<vmem>>, %arg4: memref<64x32xf32, #tpu.memory_space<vmem>>, %arg5: memref<1x32xf32, #tpu.memory_space<vmem>>, %arg6: memref<32x16xf32, #tpu.memory_space<vmem>>, %arg7: memref<1x16xf32, #tpu.memory_space<vmem>>, %arg8: memref<16x16xf32, #tpu.memory_space<vmem>>) attributes {dimension_semantics = [#tpu.dimension_semantics<parallel>], iteration_bounds = array<i64: 3>, scalar_prefetch = 0 : i64, scratch_operands = 0 : i64, tpu.core_type = #tpu.core_type<tc>, window_params = [{transform_indices = @transform_0, window_bounds = array<i64: 16, 32>}, {pipeline_mode = #tpu.pipeline_mode<synchronous>, transform_indices = @transform_1, window_bounds = array<i64: 32, 64>}, {pipeline_mode = #tpu.pipeline_mode<synchronous>, transform_indices = @transform_2, window_bounds = array<i64: 1, 64>}, {pipeline_mode = #tpu.pipeline_mode<synchronous>, transform_indices = @transform_3, window_bounds = array<i64: 64, 32>}, {pipeline_mode = #tpu.pipeline_mode<synchronous>, transform_indices = @transform_4, window_bounds = array<i64: 1, 32>}, {pipeline_mode = #tpu.pipeline_mode<synchronous>, transform_indices = @transform_5, window_bounds = array<i64: 32, 16>}, {pipeline_mode = #tpu.pipeline_mode<synchronous>, transform_indices = @transform_6, window_bounds = array<i64: 1, 16>}, {transform_indices = @transform_7, window_bounds = array<i64: 16, 16>}]} {
    %c0 = arith.constant 0 : index
    %c0_0 = arith.constant 0 : index
    %0 = vector.load %arg1[%c0, %c0_0] : memref<16x32xf32, #tpu.memory_space<vmem>>, vector<16x32xf32>
    %c0_1 = arith.constant 0 : index
    %c0_2 = arith.constant 0 : index
    %1 = vector.load %arg2[%c0_1, %c0_2] : memref<32x64xf32, #tpu.memory_space<vmem>>, vector<32x64xf32>
    %cst = arith.constant dense<0.000000e+00> : vector<16x64xf32>
    %2 = tpu.matmul %0, %1, %cst {dimension_numbers = #tpu.dot_dimension_numbers<[1], [0], [0], [1], [0, 0, 1, 1], [], []>} : vector<16x32xf32>, vector<32x64xf32>, vector<16x64xf32> -> vector<16x64xf32>
    %c0_3 = arith.constant 0 : index
    %c0_4 = arith.constant 0 : index
    %3 = vector.load %arg3[%c0_3, %c0_4] : memref<1x64xf32, #tpu.memory_space<vmem>>, vector<1x64xf32>
    %4 = vector.broadcast %3 : vector<1x64xf32> to vector<16x64xf32>
    %5 = arith.addf %2, %4 : vector<16x64xf32>
    %cst_5 = arith.constant 0.00999999977 : f32
    %6 = vector.broadcast %cst_5 : f32 to vector<16x64xf32>
    %7 = arith.mulf %6, %5 : vector<16x64xf32>
    %8 = arith.maximumf %5, %7 : vector<16x64xf32>
    %c0_6 = arith.constant 0 : index
    %c0_7 = arith.constant 0 : index
    %9 = vector.load %arg4[%c0_6, %c0_7] : memref<64x32xf32, #tpu.memory_space<vmem>>, vector<64x32xf32>
    %cst_8 = arith.constant dense<0.000000e+00> : vector<16x32xf32>
    %10 = tpu.matmul %8, %9, %cst_8 {dimension_numbers = #tpu.dot_dimension_numbers<[1], [0], [0], [1], [0, 0, 1, 1], [], []>} : vector<16x64xf32>, vector<64x32xf32>, vector<16x32xf32> -> vector<16x32xf32>
    %c0_9 = arith.constant 0 : index
    %c0_10 = arith.constant 0 : index
    %11 = vector.load %arg5[%c0_9, %c0_10] : memref<1x32xf32, #tpu.memory_space<vmem>>, vector<1x32xf32>
    %12 = vector.broadcast %11 : vector<1x32xf32> to vector<16x32xf32>
    %13 = arith.addf %10, %12 : vector<16x32xf32>
    %cst_11 = arith.constant 0.00999999977 : f32
    %14 = vector.broadcast %cst_11 : f32 to vector<16x32xf32>
    %15 = arith.mulf %14, %13 : vector<16x32xf32>
    %16 = arith.maximumf %13, %15 : vector<16x32xf32>
    %c0_12 = arith.constant 0 : index
    %c0_13 = arith.constant 0 : index
    %17 = vector.load %arg6[%c0_12, %c0_13] : memref<32x16xf32, #tpu.memory_space<vmem>>, vector<32x16xf32>
    %cst_14 = arith.constant dense<0.000000e+00> : vector<16x16xf32>
    %18 = tpu.matmul %16, %17, %cst_14 {dimension_numbers = #tpu.dot_dimension_numbers<[1], [0], [0], [1], [0, 0, 1, 1], [], []>} : vector<16x32xf32>, vector<32x16xf32>, vector<16x16xf32> -> vector<16x16xf32>
    %c0_15 = arith.constant 0 : index
    %c0_16 = arith.constant 0 : index
    %19 = vector.load %arg7[%c0_15, %c0_16] : memref<1x16xf32, #tpu.memory_space<vmem>>, vector<1x16xf32>
    %20 = vector.broadcast %19 : vector<1x16xf32> to vector<16x16xf32>
    %21 = arith.addf %18, %20 : vector<16x16xf32>
    %c0_17 = arith.constant 0 : index
    %c0_18 = arith.constant 0 : index
    %22 = vector.load %arg8[%c0_17, %c0_18] : memref<16x16xf32, #tpu.memory_space<vmem>>, vector<16x16xf32>
    tpu.vector_store %arg8[%c0_17, %c0_18], %21 {strides = array<i32>} : memref<16x16xf32, #tpu.memory_space<vmem>>, vector<16x16xf32>,
    return
  }
  func.func @transform_0(%arg0: i32) -> (i32, i32) {
    %c0_i32 = arith.constant 0 : i32
    %c0_i32_0 = arith.constant 0 : i32
    return %arg0, %c0_i32 : i32, i32
  }
  func.func @transform_1(%arg0: i32) -> (i32, i32) {
    %c0_i32 = arith.constant 0 : i32
    %c0_i32_0 = arith.constant 0 : i32
    %c0_i32_1 = arith.constant 0 : i32
    return %c0_i32, %c0_i32_0 : i32, i32
  }
  func.func @transform_2(%arg0: i32) -> (i32, i32) {
    %c0_i32 = arith.constant 0 : i32
    %c0_i32_0 = arith.constant 0 : i32
    %c0_i32_1 = arith.constant 0 : i32
    return %c0_i32, %c0_i32_0 : i32, i32
  }
  func.func @transform_3(%arg0: i32) -> (i32, i32) {
    %c0_i32 = arith.constant 0 : i32
    %c0_i32_0 = arith.constant 0 : i32
    %c0_i32_1 = arith.constant 0 : i32
    return %c0_i32, %c0_i32_0 : i32, i32
  }
  func.func @transform_4(%arg0: i32) -> (i32, i32) {
    %c0_i32 = arith.constant 0 : i32
    %c0_i32_0 = arith.constant 0 : i32
    %c0_i32_1 = arith.constant 0 : i32
    return %c0_i32, %c0_i32_0 : i32, i32
  }
  func.func @transform_5(%arg0: i32) -> (i32, i32) {
    %c0_i32 = arith.constant 0 : i32
    %c0_i32_0 = arith.constant 0 : i32
    %c0_i32_1 = arith.constant 0 : i32
    return %c0_i32, %c0_i32_0 : i32, i32
  }
  func.func @transform_6(%arg0: i32) -> (i32, i32) {
    %c0_i32 = arith.constant 0 : i32
    %c0_i32_0 = arith.constant 0 : i32
    %c0_i32_1 = arith.constant 0 : i32
    return %c0_i32, %c0_i32_0 : i32, i32
  }
  func.func @transform_7(%arg0: i32) -> (i32, i32) {
    %c0_i32 = arith.constant 0 : i32
    %c0_i32_0 = arith.constant 0 : i32
    return %arg0, %c0_i32 : i32, i32
  }
}

</mosaic_0001>

<llo_original>
// kernel: tpu_custom_call.1
$region0: #{tpu_custom_call.1}
  #allocation0 [shape = 'u32[]', space=smem, size = 0x4, offset = 0x4, fixed_abs, tag = 'smem constant byte address 0x4 - core index']
  #allocation1 [shape = 'u32[144,128]{1,0:T(1,128)}', space=vmem, size = 0x12000, scoped, tag = 'internal scratch']
  %s0 = inlined_call_operand.vmem [shape: f32[40,32], index: 0, kind: input, shape index: {}]
  %s1 = inlined_call_operand.vmem [shape: f32[32,64], index: 1, kind: input, shape index: {}]
  %s2 = inlined_call_operand.vmem [shape: f32[1,64], index: 2, kind: input, shape index: {}]
  %s3 = inlined_call_operand.vmem [shape: f32[64,32], index: 3, kind: input, shape index: {}]
  %s4 = inlined_call_operand.vmem [shape: f32[1,32], index: 4, kind: input, shape index: {}]
  %s5 = inlined_call_operand.vmem [shape: f32[32,16], index: 5, kind: input, shape index: {}]
  %s6 = inlined_call_operand.vmem [shape: f32[1,16], index: 6, kind: input, shape index: {}]
  %s7 = inlined_call_operand.vmem [shape: f32[40,16], index: 7, kind: output, shape index: {}]
  %s8 = sld [smem:[#allocation0]]
  $region109: #{tpu_custom_call.1} parent=0
    _
  %s10 = ssub.s32 1, %s8
  %s11 = scalar_select 0, %s10, %s8
  $region1: #{tpu_custom_call.1} parent=0
    #allocation2 [shape = 'u8[16384]{0}', space=vmem, size = 0x4000, scoped, tag = 'output window, operand 0']
    loop: start=0, step=1, limit=5
    $region2: #{tpu_custom_call.1} parent=1 // loop_pre_header
      _
    $region3: #{tpu_custom_call.1} parent=1 // loop_header
      %s13 = sphi 0, %s17
      %p14 = scmp.ge.s32.totalorder %s13, 5
      %s23 = sphi 0, %s25
      %s26 = sphi 0, %s23
      %s27 = sphi 0, %s26
      %s43 = sphi 0, %s27
      %s47 = sphi 0, %s47
      %s49 = sphi 0, %s47
      %s50 = sphi 0, %s49
      %s64 = sphi 0, %s50
      %s68 = sphi 0, %s68
      %s70 = sphi 0, %s68
      %s71 = sphi 0, %s70
      %s85 = sphi 0, %s71
      %s89 = sphi 0, %s89
      %s91 = sphi 0, %s89
      %s92 = sphi 0, %s91
      %s106 = sphi 0, %s92
      %s110 = sphi 0, %s110
      %s112 = sphi 0, %s110
      %s113 = sphi 0, %s112
      %s127 = sphi 0, %s113
      %s131 = sphi 0, %s131
      %s133 = sphi 0, %s131
      %s134 = sphi 0, %s133
      %s148 = sphi 0, %s134
      %s152 = sphi 0, %s152
      %s154 = sphi 0, %s152
      %s155 = sphi 0, %s154
      %s169 = sphi 0, %s155
      %s175 = sphi 0, %s177
      %s178 = sphi 0, %s175
      %s179 = sphi 0, %s178
      %s195 = sphi 0, %s179
    $region4: #{tpu_custom_call.1} parent=1 // loop_header_branch
      %16 = sbr.rel (%p14) target = $region8
    $region5: #{tpu_custom_call.1} parent=1 // loop_body
      %s18 = ssub.s32 %s13, 1
      %s19 = ssub.s32 %s13, 2
      %s20 = sadd.s32 %s13, 1
      %s21 = ssub.s32 %s13, %s20
      %p22 = scmp.eq.s32.totalorder %s21, 0
      %s24 = sadd.s32 %s23, 1
      %s25 = scalar_select %p22, %s23, %s24
      %p28 = pneg %p22
      %p29 = scmp.eq.s32.totalorder %s13, 2
      %p30 = por %p28, %p29
      %p31 = scmp.ne.s32.totalorder %s23, %s26
      %p32 = scmp.eq.s32.totalorder %s13, 0
      %p33 = por %p31, %p32
      %p34 = scmp.ne.s32.totalorder %s23, %s26
      %p35 = scmp.eq.s32.totalorder %s18, 2
      %p36 = por %p34, %p35
      %p37 = scmp.ne.s32.totalorder %s26, %s27
      %p38 = scmp.eq.s32.totalorder %s18, 0
      %p39 = por %p37, %p38
      %p40 = scmp.ne.s32.totalorder %s26, %s27
      %p41 = scmp.eq.s32.totalorder %s19, 2
      %p42 = por %p40, %p41
      %p44 = scmp.ne.s32.totalorder %s27, %s43
      %p45 = scmp.eq.s32.totalorder %s19, 0
      %p46 = por %p44, %p45
      %s48 = sadd.s32 %s47, 1
      %p51 = scmp.eq.s32.totalorder %s13, 2
      %p52 = scmp.ne.s32.totalorder %s47, %s49
      %p53 = scmp.eq.s32.totalorder %s13, 0
      %p54 = por %p52, %p53
      %p55 = scmp.ne.s32.totalorder %s47, %s49
      %p56 = scmp.eq.s32.totalorder %s18, 2
      %p57 = por %p55, %p56
      %p58 = scmp.ne.s32.totalorder %s49, %s50
      %p59 = scmp.eq.s32.totalorder %s18, 0
      %p60 = por %p58, %p59
      %p61 = scmp.ne.s32.totalorder %s49, %s50
      %p62 = scmp.eq.s32.totalorder %s19, 2
      %p63 = por %p61, %p62
      %p65 = scmp.ne.s32.totalorder %s50, %s64
      %p66 = scmp.eq.s32.totalorder %s19, 0
      %p67 = por %p65, %p66
      %s69 = sadd.s32 %s68, 1
      %p72 = scmp.eq.s32.totalorder %s13, 2
      %p73 = scmp.ne.s32.totalorder %s68, %s70
      %p74 = scmp.eq.s32.totalorder %s13, 0
      %p75 = por %p73, %p74
      %p76 = scmp.ne.s32.totalorder %s68, %s70
      %p77 = scmp.eq.s32.totalorder %s18, 2
      %p78 = por %p76, %p77
      %p79 = scmp.ne.s32.totalorder %s70, %s71
      %p80 = scmp.eq.s32.totalorder %s18, 0
      %p81 = por %p79, %p80
      %p82 = scmp.ne.s32.totalorder %s70, %s71
      %p83 = scmp.eq.s32.totalorder %s19, 2
      %p84 = por %p82, %p83
      %p86 = scmp.ne.s32.totalorder %s71, %s85
      %p87 = scmp.eq.s32.totalorder %s19, 0
      %p88 = por %p86, %p87
      %s90 = sadd.s32 %s89, 1
      %p93 = scmp.eq.s32.totalorder %s13, 2
      %p94 = scmp.ne.s32.totalorder %s89, %s91
      %p95 = scmp.eq.s32.totalorder %s13, 0
      %p96 = por %p94, %p95
      %p97 = scmp.ne.s32.totalorder %s89, %s91
      %p98 = scmp.eq.s32.totalorder %s18, 2
      %p99 = por %p97, %p98
      %p100 = scmp.ne.s32.totalorder %s91, %s92
      %p101 = scmp.eq.s32.totalorder %s18, 0
      %p102 = por %p100, %p101
      %p103 = scmp.ne.s32.totalorder %s91, %s92
      %p104 = scmp.eq.s32.totalorder %s19, 2
      %p105 = por %p103, %p104
      %p107 = scmp.ne.s32.totalorder %s92, %s106
      %p108 = scmp.eq.s32.totalorder %s19, 0
      %p109 = por %p107, %p108
      %s111 = sadd.s32 %s110, 1
      %p114 = scmp.eq.s32.totalorder %s13, 2
      %p115 = scmp.ne.s32.totalorder %s110, %s112
      %p116 = scmp.eq.s32.totalorder %s13, 0
      %p117 = por %p115, %p116
      %p118 = scmp.ne.s32.totalorder %s110, %s112
      %p119 = scmp.eq.s32.totalorder %s18, 2
      %p120 = por %p118, %p119
      %p121 = scmp.ne.s32.totalorder %s112, %s113
      %p122 = scmp.eq.s32.totalorder %s18, 0
      %p123 = por %p121, %p122
      %p124 = scmp.ne.s32.totalorder %s112, %s113
      %p125 = scmp.eq.s32.totalorder %s19, 2
      %p126 = por %p124, %p125
      %p128 = scmp.ne.s32.totalorder %s113, %s127
      %p129 = scmp.eq.s32.totalorder %s19, 0
      %p130 = por %p128, %p129
      %s132 = sadd.s32 %s131, 1
      %p135 = scmp.eq.s32.totalorder %s13, 2
      %p136 = scmp.ne.s32.totalorder %s131, %s133
      %p137 = scmp.eq.s32.totalorder %s13, 0
      %p138 = por %p136, %p137
      %p139 = scmp.ne.s32.totalorder %s131, %s133
      %p140 = scmp.eq.s32.totalorder %s18, 2
      %p141 = por %p139, %p140
      %p142 = scmp.ne.s32.totalorder %s133, %s134
      %p143 = scmp.eq.s32.totalorder %s18, 0
      %p144 = por %p142, %p143
      %p145 = scmp.ne.s32.totalorder %s133, %s134
      %p146 = scmp.eq.s32.totalorder %s19, 2
      %p147 = por %p145, %p146
      %p149 = scmp.ne.s32.totalorder %s134, %s148
      %p150 = scmp.eq.s32.totalorder %s19, 0
      %p151 = por %p149, %p150
      %s153 = sadd.s32 %s152, 1
      %p156 = scmp.eq.s32.totalorder %s13, 2
      %p157 = scmp.ne.s32.totalorder %s152, %s154
      %p158 = scmp.eq.s32.totalorder %s13, 0
      %p159 = por %p157, %p158
      %p160 = scmp.ne.s32.totalorder %s152, %s154
      %p161 = scmp.eq.s32.totalorder %s18, 2
      %p162 = por %p160, %p161
      %p163 = scmp.ne.s32.totalorder %s154, %s155
      %p164 = scmp.eq.s32.totalorder %s18, 0
      %p165 = por %p163, %p164
      %p166 = scmp.ne.s32.totalorder %s154, %s155
      %p167 = scmp.eq.s32.totalorder %s19, 2
      %p168 = por %p166, %p167
      %p170 = scmp.ne.s32.totalorder %s155, %s169
      %p171 = scmp.eq.s32.totalorder %s19, 0
      %p172 = por %p170, %p171
      %s173 = ssub.s32 %s13, %s20
      %p174 = scmp.eq.s32.totalorder %s173, 0
      %s176 = sadd.s32 %s175, 1
      %s177 = scalar_select %p174, %s175, %s176
      %p180 = pneg %p174
      %p181 = scmp.eq.s32.totalorder %s13, 2
      %p182 = por %p180, %p181
      %p183 = scmp.ne.s32.totalorder %s175, %s178
      %p184 = scmp.eq.s32.totalorder %s13, 0
      %p185 = por %p183, %p184
      %p186 = scmp.ne.s32.totalorder %s175, %s178
      %p187 = scmp.eq.s32.totalorder %s18, 2
      %p188 = por %p186, %p187
      %p189 = scmp.ne.s32.totalorder %s178, %s179
      %p190 = scmp.eq.s32.totalorder %s18, 0
      %p191 = por %p189, %p190
      %p192 = scmp.ne.s32.totalorder %s178, %s179
      %p193 = scmp.eq.s32.totalorder %s19, 2
      %p194 = por %p192, %p193
      %p196 = scmp.ne.s32.totalorder %s179, %s195
      %p197 = scmp.eq.s32.totalorder %s19, 0
      %p198 = por %p196, %p197
      %p199 = scmp.le.s32.totalorder 1, %s13
      %p200 = scmp.lt.s32.totalorder %s13, 4
      %p201 = pnand %p199, %p200
      %p202 = pneg %p201
      // Predicated region
      $region9: #{tpu_custom_call.1} parent=5 // pred_check
        _
      $region10: #{tpu_custom_call.1} parent=5 // pred_check_branch
        %204 = sbr.rel (%p201) target = $region12
      $region11: #{tpu_custom_call.1} parent=5 // pred_region
        %s205 = ssub.s32 %s13, 1
        // Predicated region
        $region13: #{tpu_custom_call.1} parent=11 // pred_check
          %p206 = pneg %p60
        $region14: #{tpu_custom_call.1} parent=11 // pred_check_branch
          %208 = sbr.rel (%p206) target = $region16
        $region15: #{tpu_custom_call.1} parent=11 // pred_region
          _
        $region16: #{tpu_custom_call.1} parent=11 // pred_fallthru
          _
        // Predicated region
        $region17: #{tpu_custom_call.1} parent=11 // pred_check
          %p209 = pneg %p81
        $region18: #{tpu_custom_call.1} parent=11 // pred_check_branch
          %211 = sbr.rel (%p209) target = $region20
        $region19: #{tpu_custom_call.1} parent=11 // pred_region
          _
        $region20: #{tpu_custom_call.1} parent=11 // pred_fallthru
          _
        // Predicated region
        $region21: #{tpu_custom_call.1} parent=11 // pred_check
          %p212 = pneg %p102
        $region22: #{tpu_custom_call.1} parent=11 // pred_check_branch
          %214 = sbr.rel (%p212) target = $region24
        $region23: #{tpu_custom_call.1} parent=11 // pred_region
          _
        $region24: #{tpu_custom_call.1} parent=11 // pred_fallthru
          _
        // Predicated region
        $region25: #{tpu_custom_call.1} parent=11 // pred_check
          %p215 = pneg %p123
        $region26: #{tpu_custom_call.1} parent=11 // pred_check_branch
          %217 = sbr.rel (%p215) target = $region28
        $region27: #{tpu_custom_call.1} parent=11 // pred_region
          _
        $region28: #{tpu_custom_call.1} parent=11 // pred_fallthru
          _
        // Predicated region
        $region29: #{tpu_custom_call.1} parent=11 // pred_check
          %p218 = pneg %p144
        $region30: #{tpu_custom_call.1} parent=11 // pred_check_branch
          %220 = sbr.rel (%p218) target = $region32
        $region31: #{tpu_custom_call.1} parent=11 // pred_region
          _
        $region32: #{tpu_custom_call.1} parent=11 // pred_fallthru
          _
        // Predicated region
        $region33: #{tpu_custom_call.1} parent=11 // pred_check
          %p221 = pneg %p165
        $region34: #{tpu_custom_call.1} parent=11 // pred_check_branch
          %223 = sbr.rel (%p221) target = $region36
        $region35: #{tpu_custom_call.1} parent=11 // pred_region
          _
        $region36: #{tpu_custom_call.1} parent=11 // pred_fallthru
          _
      $region12: #{tpu_custom_call.1} parent=5 // pred_fallthru
        _
      %p224 = scmp.lt.s32.totalorder %s13, 3
      // Predicated region
      $region37: #{tpu_custom_call.1} parent=5 // pred_check
        %p225 = pneg %p224
      $region38: #{tpu_custom_call.1} parent=5 // pred_check_branch
        %227 = sbr.rel (%p225) target = $region40
      $region39: #{tpu_custom_call.1} parent=5 // pred_region
        // Predicated region
        $region41: #{tpu_custom_call.1} parent=39 // pred_check
          %p228 = pneg %p33
        $region42: #{tpu_custom_call.1} parent=39 // pred_check_branch
          %230 = sbr.rel (%p228) target = $region44
        $region43: #{tpu_custom_call.1} parent=39 // pred_region
          %s231 = smul.u32 2, %s13
          %s232 = ssub.s32 5, %s231
          %p233 = scmp.lt.s32.totalorder %s232, 2
          %s234 = scalar_select %p233, %s232, 2
          %s235 = smul.u32 128, %s234
          %p236 = scmp.lt.s32.totalorder %s231, 4
          %s237 = scalar_select %p236, %s231, 4
          %s238 = smul.addr %s237, 8
          %s239 = scalar_lea.vmem %s0, %s238
          %s240 = smul.u32 2, %s13
          %s241 = ssub.s32 5, %s240
          %p242 = scmp.lt.s32.totalorder %s241, 2
          %s243 = scalar_select %p242, %s241, 2
          %s244 = smul.u32 128, %s243
        $region44: #{tpu_custom_call.1} parent=39 // pred_fallthru
          _
      $region40: #{tpu_custom_call.1} parent=5 // pred_fallthru
        _
      %p245 = scmp.le.s32.totalorder 1, %s13
      %p246 = scmp.lt.s32.totalorder %s13, 4
      %p247 = pnand %p245, %p246
      %p248 = pneg %p247
      // Predicated region
      $region45: #{tpu_custom_call.1} parent=5 // pred_check
        _
      $region46: #{tpu_custom_call.1} parent=5 // pred_check_branch
        %250 = sbr.rel (%p247) target = $region48
      $region47: #{tpu_custom_call.1} parent=5 // pred_region
        %s251 = ssub.s32 %s13, 1
        %s252 = smul.u32 2, %s18
        %s253 = ssub.s32 5, %s252
        %p254 = scmp.lt.s32.totalorder %s253, 2
        %s255 = scalar_select %p254, %s253, 2
        %s256 = smul.u32 128, %s255
        %p257 = scmp.lt.s32.totalorder %s252, 4
        %s258 = scalar_select %p257, %s252, 4
        %s259 = smul.addr %s258, 8
        %s260 = scalar_lea.vmem %s0, %s259
        %p261 = pneg %p39
        %p262 = pneg %p36
        %p263 = pneg %p60
        %p264 = pneg %p57
        %p265 = pneg %p81
        %p266 = pneg %p78
        %p267 = pneg %p102
        %p268 = pneg %p99
        %p269 = pneg %p123
        %p270 = pneg %p120
        %p271 = pneg %p144
        %p272 = pneg %p141
        %p273 = pneg %p165
        %p274 = pneg %p162
        %p275 = pneg %p191
        %p276 = pneg %p188
        %s277 = sand.u32 %s178, 1
        %s278 = sand.u32 %s178, 1
        %s279 = smul.addr %s278, 16
        %s280 = scalar_lea.vmem [#allocation2], %s279
        %s281 = smul.u32 2, %s18
        %s282 = ssub.s32 5, %s281
        %p283 = scmp.lt.s32.totalorder %s282, 2
        %s284 = scalar_select %p283, %s282, 2
        %s285 = smul.u32 128, %s284
        %p286 = scmp.lt.s32.totalorder %s281, 4
        %s287 = scalar_select %p286, %s281, 4
        %s288 = smul.addr %s287, 8
        %s289 = scalar_lea.vmem %s0, %s288
        %s290 = smul.u32 2, %s18
        %s291 = ssub.s32 5, %s290
        %p292 = scmp.lt.s32.totalorder %s291, 2
        %s293 = scalar_select %p292, %s291, 2
        %s294 = smul.u32 128, %s293
        %s295 = smul.u32 2, %s18
        %s296 = ssub.s32 5, %s295
        %p297 = scmp.lt.s32.totalorder %s296, 2
        %s298 = scalar_select %p297, %s296, 2
        %s299 = smul.u32 128, %s298
        %v300 = vld [vmem:[%s289] sm:$0xff]
        %v301 = vld [vmem:[%s289 + $0x8] sm:$0xff]
        %v302 = vld [vmem:[%s1] sm:$0xff]
        %v303 = vld [vmem:[%s1 + $0x8] sm:$0xff]
        %v304 = vld [vmem:[%s1 + $0x10] sm:$0xff]
        %v305 = vld [vmem:[%s1 + $0x18] sm:$0xff]
        %v306 = vld [vmem:[%s2] sm:$0x1]
        %v308 = vlaneseq
        %v309 = vshrl.u32 %v308, 7
        %v310 = vsub.s32 0, %v309
        %v311 = vrot.slane %v306, %v310
        %vm313 = vcmask 261120
        %v315 = vsel %vm313, %v300, 0
        %v318 = vsel %vm313, %v301, 0
        %320 = vmatprep.subr.mxu0 0.0
        %321 = vmatpush1.msra.mxu0 %v302
        %322 = vmatprep.subr.mxu0 0.0
        %323 = vmatpush1.msra.mxu0 %v303
        %324 = vmatprep.subr.mxu0 0.0
        %325 = vmatpush1.msra.mxu0 %v304
        %326 = vmatprep.subr.mxu0 0.0
        %327 = vmatpush1.msra.mxu0 %v305
        %328 = vmatprep.subr.mxu0 0.0
        %329 = vmatpush1.msra.mxu0 0.0
        %330 = vmatprep.subr.mxu0 0.0
        %331 = vmatpush1.msra.mxu0 0.0
        %332 = vmatprep.subr.mxu0 0.0
        %333 = vmatpush1.msra.mxu0 0.0
        %334 = vmatprep.subr.mxu0 0.0
        %335 = vmatpush1.msra.mxu0 0.0
        %336 = vmatprep.subr.mxu0 0.0
        %337 = vmatpush1.msra.mxu0 0.0
        %338 = vmatprep.subr.mxu0 0.0
        %339 = vmatpush1.msra.mxu0 0.0
        %340 = vmatprep.subr.mxu0 0.0
        %341 = vmatpush1.msra.mxu0 0.0
        %342 = vmatprep.subr.mxu0 0.0
        %343 = vmatpush1.msra.mxu0 0.0
        %344 = vmatprep.subr.mxu0 0.0
        %345 = vmatpush1.msra.mxu0 0.0
        %346 = vmatprep.subr.mxu0 0.0
        %347 = vmatpush1.msra.mxu0 0.0
        %348 = vmatprep.subr.mxu0 0.0
        %349 = vmatpush1.msra.mxu0 0.0
        %350 = vmatprep.subr.mxu0 0.0
        %351 = vmatpush1.msra.mxu0 0.0
        %352 = vmatprep.subr.mxu0 0.0
        %353 = vmatpush1.msra.mxu0 0.0
        %354 = vmatprep.subr.mxu0 0.0
        %355 = vmatpush1.msra.mxu0 0.0
        %356 = vmatprep.subr.mxu0 0.0
        %357 = vmatpush1.msra.mxu0 0.0
        %358 = vmatprep.subr.mxu0 0.0
        %359 = vmatpush1.msra.mxu0 0.0
        %360 = vmatprep.subr.mxu0 0.0
        %361 = vmatpush1.msra.mxu0 0.0
        %362 = vmatprep.subr.mxu0 0.0
        %363 = vmatpush1.msra.mxu0 0.0
        %364 = vmatprep.subr.mxu0 0.0
        %365 = vmatpush1.msra.mxu0 0.0
        %366 = vmatprep.subr.mxu0 0.0
        %367 = vmatpush1.msra.mxu0 0.0
        %368 = vmatprep.subr.mxu0 0.0
        %369 = vmatpush1.msra.mxu0 0.0
        %370 = vmatprep.subr.mxu0 0.0
        %371 = vmatpush1.msra.mxu0 0.0
        %372 = vmatprep.subr.mxu0 0.0
        %373 = vmatpush1.msra.mxu0 0.0
        %374 = vmatprep.subr.mxu0 0.0
        %375 = vmatpush1.msra.mxu0 0.0
        %376 = vmatprep.subr.mxu0 0.0
        %377 = vmatpush1.msra.mxu0 0.0
        %378 = vmatprep.subr.mxu0 0.0
        %379 = vmatpush1.msra.mxu0 0.0
        %380 = vmatprep.subr.mxu0 0.0
        %381 = vmatpush1.msra.mxu0 0.0
        %382 = vmatprep.subr.mxu0 0.0
        %383 = vmatpush1.msra.mxu0 0.0
        %384 = vmatprep.mubr.f32.mxu0 0.0
        %385 = vmatmul.mubr.f32.gmra.mrb[0].mxu0 %v315
        %v386 = vpop.f32.mrb[0].mxu0
        %v387 = vadd.f32 %v311, %v386
        %v388 = vpop.f32.mrb[0].mxu0
        %389 = vmatprep.mubr.f32.mxu0 0.0
        %390 = vmatmul.mubr.f32.gmra.mrb[0].mxu0 %v318
        %v391 = vpop.f32.mrb[0].mxu0
        %v392 = vadd.f32 %v311, %v391
        %v393 = vpop.f32.mrb[0].mxu0
        %394 = vdwg.mxu0
        %v395 = vmul.f32 %v387, 0.01
        %v396 = vmul.f32 %v392, 0.01
        %v397 = vmax.f32 %v387, %v395
        %v398 = vmax.f32 %v392, %v396
        %v399 = vld [vmem:[%s3] sm:$0xff]
        %v400 = vld [vmem:[%s3 + $0x8] sm:$0xff]
        %v401 = vld [vmem:[%s3 + $0x10] sm:$0xff]
        %v402 = vld [vmem:[%s3 + $0x18] sm:$0xff]
        %v403 = vld [vmem:[%s3 + $0x20] sm:$0xff]
        %v404 = vld [vmem:[%s3 + $0x28] sm:$0xff]
        %v405 = vld [vmem:[%s3 + $0x30] sm:$0xff]
        %v406 = vld [vmem:[%s3 + $0x38] sm:$0xff]
        %v407 = vld [vmem:[%s4] sm:$0x1]
        %v409 = vlaneseq
        %v410 = vshrl.u32 %v409, 7
        %v411 = vsub.s32 0, %v410
        %v412 = vrot.slane %v407, %v411
        %vm414 = vcmask 523264
        %v416 = vsel %vm414, %v397, 0
        %v419 = vsel %vm414, %v398, 0
        %421 = vmatprep.subr.mxu0 0.0
        %422 = vmatpush1.msra.mxu0 %v399
        %423 = vmatprep.subr.mxu0 0.0
        %424 = vmatpush1.msra.mxu0 %v400
        %425 = vmatprep.subr.mxu0 0.0
        %426 = vmatpush1.msra.mxu0 %v401
        %427 = vmatprep.subr.mxu0 0.0
        %428 = vmatpush1.msra.mxu0 %v402
        %429 = vmatprep.subr.mxu0 0.0
        %430 = vmatpush1.msra.mxu0 %v403
        %431 = vmatprep.subr.mxu0 0.0
        %432 = vmatpush1.msra.mxu0 %v404
        %433 = vmatprep.subr.mxu0 0.0
        %434 = vmatpush1.msra.mxu0 %v405
        %435 = vmatprep.subr.mxu0 0.0
        %436 = vmatpush1.msra.mxu0 %v406
        %437 = vmatprep.subr.mxu0 0.0
        %438 = vmatpush1.msra.mxu0 0.0
        %439 = vmatprep.subr.mxu0 0.0
        %440 = vmatpush1.msra.mxu0 0.0
        %441 = vmatprep.subr.mxu0 0.0
        %442 = vmatpush1.msra.mxu0 0.0
        %443 = vmatprep.subr.mxu0 0.0
        %444 = vmatpush1.msra.mxu0 0.0
        %445 = vmatprep.subr.mxu0 0.0
        %446 = vmatpush1.msra.mxu0 0.0
        %447 = vmatprep.subr.mxu0 0.0
        %448 = vmatpush1.msra.mxu0 0.0
        %449 = vmatprep.subr.mxu0 0.0
        %450 = vmatpush1.msra.mxu0 0.0
        %451 = vmatprep.subr.mxu0 0.0
        %452 = vmatpush1.msra.mxu0 0.0
        %453 = vmatprep.subr.mxu0 0.0
        %454 = vmatpush1.msra.mxu0 0.0
        %455 = vmatprep.subr.mxu0 0.0
        %456 = vmatpush1.msra.mxu0 0.0
        %457 = vmatprep.subr.mxu0 0.0
        %458 = vmatpush1.msra.mxu0 0.0
        %459 = vmatprep.subr.mxu0 0.0
        %460 = vmatpush1.msra.mxu0 0.0
        %461 = vmatprep.subr.mxu0 0.0
        %462 = vmatpush1.msra.mxu0 0.0
        %463 = vmatprep.subr.mxu0 0.0
        %464 = vmatpush1.msra.mxu0 0.0
        %465 = vmatprep.subr.mxu0 0.0
        %466 = vmatpush1.msra.mxu0 0.0
        %467 = vmatprep.subr.mxu0 0.0
        %468 = vmatpush1.msra.mxu0 0.0
        %469 = vmatprep.subr.mxu0 0.0
        %470 = vmatpush1.msra.mxu0 0.0
        %471 = vmatprep.subr.mxu0 0.0
        %472 = vmatpush1.msra.mxu0 0.0
        %473 = vmatprep.subr.mxu0 0.0
        %474 = vmatpush1.msra.mxu0 0.0
        %475 = vmatprep.subr.mxu0 0.0
        %476 = vmatpush1.msra.mxu0 0.0
        %477 = vmatprep.subr.mxu0 0.0
        %478 = vmatpush1.msra.mxu0 0.0
        %479 = vmatprep.subr.mxu0 0.0
        %480 = vmatpush1.msra.mxu0 0.0
        %481 = vmatprep.subr.mxu0 0.0
        %482 = vmatpush1.msra.mxu0 0.0
        %483 = vmatprep.subr.mxu0 0.0
        %484 = vmatpush1.msra.mxu0 0.0
        %485 = vmatprep.mubr.f32.mxu0 0.0
        %486 = vmatmul.mubr.f32.gmra.mrb[0].mxu0 %v416
        %v487 = vpop.f32.mrb[0].mxu0
        %v488 = vadd.f32 %v412, %v487
        %v489 = vpop.f32.mrb[0].mxu0
        %490 = vmatprep.mubr.f32.mxu0 0.0
        %491 = vmatmul.mubr.f32.gmra.mrb[0].mxu0 %v419
        %v492 = vpop.f32.mrb[0].mxu0
        %v493 = vadd.f32 %v412, %v492
        %v494 = vpop.f32.mrb[0].mxu0
        %495 = vdwg.mxu0
        %v496 = vmul.f32 %v488, 0.01
        %v497 = vmul.f32 %v493, 0.01
        %v498 = vmax.f32 %v488, %v496
        %v499 = vmax.f32 %v493, %v497
        %v500 = vld [vmem:[%s5] sm:$0xff]
        %v501 = vld [vmem:[%s5 + $0x8] sm:$0xff]
        %v502 = vld [vmem:[%s5 + $0x10] sm:$0xff]
        %v503 = vld [vmem:[%s5 + $0x18] sm:$0xff]
        %v504 = vld [vmem:[%s6] sm:$0x1]
        %v506 = vlaneseq
        %v507 = vshrl.u32 %v506, 7
        %v508 = vsub.s32 0, %v507
        %v509 = vrot.slane %v504, %v508
        %v512 = vsel %vm313, %v498, 0
        %v515 = vsel %vm313, %v499, 0
        %517 = vmatprep.subr.mxu0 0.0
        %518 = vmatpush1.msra.mxu0 %v500
        %519 = vmatprep.subr.mxu0 0.0
        %520 = vmatpush1.msra.mxu0 %v501
        %521 = vmatprep.subr.mxu0 0.0
        %522 = vmatpush1.msra.mxu0 %v502
        %523 = vmatprep.subr.mxu0 0.0
        %524 = vmatpush1.msra.mxu0 %v503
        %525 = vmatprep.subr.mxu0 0.0
        %526 = vmatpush1.msra.mxu0 0.0
        %527 = vmatprep.subr.mxu0 0.0
        %528 = vmatpush1.msra.mxu0 0.0
        %529 = vmatprep.subr.mxu0 0.0
        %530 = vmatpush1.msra.mxu0 0.0
        %531 = vmatprep.subr.mxu0 0.0
        %532 = vmatpush1.msra.mxu0 0.0
        %533 = vmatprep.subr.mxu0 0.0
        %534 = vmatpush1.msra.mxu0 0.0
        %535 = vmatprep.subr.mxu0 0.0
        %536 = vmatpush1.msra.mxu0 0.0
        %537 = vmatprep.subr.mxu0 0.0
        %538 = vmatpush1.msra.mxu0 0.0
        %539 = vmatprep.subr.mxu0 0.0
        %540 = vmatpush1.msra.mxu0 0.0
        %541 = vmatprep.subr.mxu0 0.0
        %542 = vmatpush1.msra.mxu0 0.0
        %543 = vmatprep.subr.mxu0 0.0
        %544 = vmatpush1.msra.mxu0 0.0
        %545 = vmatprep.subr.mxu0 0.0
        %546 = vmatpush1.msra.mxu0 0.0
        %547 = vmatprep.subr.mxu0 0.0
        %548 = vmatpush1.msra.mxu0 0.0
        %549 = vmatprep.subr.mxu0 0.0
        %550 = vmatpush1.msra.mxu0 0.0
        %551 = vmatprep.subr.mxu0 0.0
        %552 = vmatpush1.msra.mxu0 0.0
        %553 = vmatprep.subr.mxu0 0.0
        %554 = vmatpush1.msra.mxu0 0.0
        %555 = vmatprep.subr.mxu0 0.0
        %556 = vmatpush1.msra.mxu0 0.0
        %557 = vmatprep.subr.mxu0 0.0
        %558 = vmatpush1.msra.mxu0 0.0
        %559 = vmatprep.subr.mxu0 0.0
        %560 = vmatpush1.msra.mxu0 0.0
        %561 = vmatprep.subr.mxu0 0.0
        %562 = vmatpush1.msra.mxu0 0.0
        %563 = vmatprep.subr.mxu0 0.0
        %564 = vmatpush1.msra.mxu0 0.0
        %565 = vmatprep.subr.mxu0 0.0
        %566 = vmatpush1.msra.mxu0 0.0
        %567 = vmatprep.subr.mxu0 0.0
        %568 = vmatpush1.msra.mxu0 0.0
        %569 = vmatprep.subr.mxu0 0.0
        %570 = vmatpush1.msra.mxu0 0.0
        %571 = vmatprep.subr.mxu0 0.0
        %572 = vmatpush1.msra.mxu0 0.0
        %573 = vmatprep.subr.mxu0 0.0
        %574 = vmatpush1.msra.mxu0 0.0
        %575 = vmatprep.subr.mxu0 0.0
        %576 = vmatpush1.msra.mxu0 0.0
        %577 = vmatprep.subr.mxu0 0.0
        %578 = vmatpush1.msra.mxu0 0.0
        %579 = vmatprep.subr.mxu0 0.0
        %580 = vmatpush1.msra.mxu0 0.0
        %581 = vmatprep.mubr.f32.mxu0 0.0
        %582 = vmatmul.mubr.f32.gmra.mrb[0].mxu0 %v512
        %v583 = vpop.f32.mrb[0].mxu0
        %v584 = vadd.f32 %v509, %v583
        %v585 = vpop.f32.mrb[0].mxu0
        %586 = vmatprep.mubr.f32.mxu0 0.0
        %587 = vmatmul.mubr.f32.gmra.mrb[0].mxu0 %v515
        %v588 = vpop.f32.mrb[0].mxu0
        %v589 = vadd.f32 %v509, %v588
        %v590 = vpop.f32.mrb[0].mxu0
        %591 = vdwg.mxu0
        %vm592 = vcmask 130048
        %593 = vst.msk [vmem:[%s280] sm:$0xff] %vm592, %v584
        %594 = vst.msk [vmem:[%s280 + $0x8] sm:$0xff] %vm592, %v589
        %s595 = sand.u32 %s178, 1
        %s596 = sand.u32 %s178, 1
        %s597 = smul.addr %s596, 16
        %s598 = scalar_lea.vmem [#allocation2], %s597
        // Predicated region
        $region49: #{tpu_custom_call.1} parent=47 // pred_check
          %p599 = pneg %p188
        $region50: #{tpu_custom_call.1} parent=47 // pred_check_branch
          %601 = sbr.rel (%p599) target = $region52
        $region51: #{tpu_custom_call.1} parent=47 // pred_region
          %s602 = smul.u32 2, %s18
          %s603 = ssub.s32 5, %s602
          %p604 = scmp.lt.s32.totalorder %s603, 2
          %s605 = scalar_select %p604, %s603, 2
          %s606 = smul.u32 128, %s605
          %p607 = scmp.ne.s32.totalorder 0, %s606
          %s608 = smul.addr %s602, 8
          %s609 = scalar_lea.vmem %s7, %s608
          // Predicated region
          $region53: #{tpu_custom_call.1} parent=51 // pred_check
            %p610 = pneg %p607
          $region54: #{tpu_custom_call.1} parent=51 // pred_check_branch
            %612 = sbr.rel (%p610) target = $region56
          $region55: #{tpu_custom_call.1} parent=51 // pred_region
            // Predicated region
            $region57: #{tpu_custom_call.1} parent=55 // pred_check
              _
            $region58: #{tpu_custom_call.1} parent=55 // pred_check_branch
              %614 = sbr.rel (0) target = $region60
            $region59: #{tpu_custom_call.1} parent=55 // pred_region
              // Predicated region
              $region79: #{tpu_custom_call.1} parent=59 // pred_check
                _
              $region80: #{tpu_custom_call.1} parent=59 // pred_check_branch
                %665 = sbr.rel (0) target = $region82
              $region81: #{tpu_custom_call.1} parent=59 // pred_region
                %s666 = sshrl.u32 %s605, 1
                // While loop
                $region83: #{tpu_custom_call.1} parent=81 // loop_pre_header
                  _
                $region84: #{tpu_custom_call.1} parent=81 // loop_header
                  %s668 = sphi 0, %s670
                  %p669 = scmp.ge.s32.totalorder %s668, %s666
                  %s673 = sphi 0, %s682
                  %s674 = sphi %s598, %s685
                  %s675 = sphi %s609, %s686
                $region85: #{tpu_custom_call.1} parent=81 // loop_header_branch
                  %672 = sbr.rel (%p669) target = $region89
                $region86: #{tpu_custom_call.1} parent=81 // loop_body
                  %v676 = vld [vmem:[%s674] sm:$0xff]
                  %677 = vst [vmem:[%s675] sm:$0xff] %v676
                  %v678 = vld [vmem:[%s674 + $0x8] sm:$0xff]
                  %679 = vst [vmem:[%s675 + $0x8] sm:$0xff] %v678
                  %s680 = sadd.s32 1, %s673
                  %p681 = scmp.ge.s32.totalorder %s680, %s666
                  %s682 = scalar_select %p681, 0, %s680
                  %s683 = smul.u32 %s682, 16
                  %s684 = smul.u32 %s682, 16
                  %s685 = scalar_lea.vmem %s598, %s683 [#allocation2]
                  %s686 = scalar_lea.vmem %s609, %s684
                $region87: #{tpu_custom_call.1} parent=81 // loop_footer
                  %s670 = sadd.s32 %s668, 1
                $region88: #{tpu_custom_call.1} parent=81 // loop_footer_branch
                  %667 = sbr.rel target = $region84
                $region89: #{tpu_custom_call.1} parent=81 // loop_exit
                  _
                %s687 = sshrl.u32 %s605, 1
                %s688 = sand.u32 %s605, 1
                %s689 = smul.u32 %s687, 2
                %s690 = smul.u32 8, %s689
                %s691 = scalar_lea.vmem %s598, %s690 [#allocation2]
                %s692 = smul.u32 8, %s689
                %s693 = scalar_lea.vmem %s609, %s692
                // While loop
                $region90: #{tpu_custom_call.1} parent=81 // loop_pre_header
                  _
                $region91: #{tpu_custom_call.1} parent=81 // loop_header
                  %s695 = sphi 0, %s697
                  %p696 = scmp.ge.s32.totalorder %s695, %s688
                  %s700 = sphi 0, %s707
                  %s701 = sphi %s691, %s710
                  %s702 = sphi %s693, %s711
                $region92: #{tpu_custom_call.1} parent=81 // loop_header_branch
                  %699 = sbr.rel (%p696) target = $region96
                $region93: #{tpu_custom_call.1} parent=81 // loop_body
                  %v703 = vld [vmem:[%s701] sm:$0xff]
                  %704 = vst [vmem:[%s702] sm:$0xff] %v703
                  %s705 = sadd.s32 1, %s700
                  %p706 = scmp.ge.s32.totalorder %s705, %s688
                  %s707 = scalar_select %p706, 0, %s705
                  %s708 = smul.u32 %s707, 8
                  %s709 = smul.u32 %s707, 8
                  %s710 = scalar_lea.vmem %s691, %s708 [#allocation2]
                  %s711 = scalar_lea.vmem %s693, %s709
                $region94: #{tpu_custom_call.1} parent=81 // loop_footer
                  %s697 = sadd.s32 %s695, 1
                $region95: #{tpu_custom_call.1} parent=81 // loop_footer_branch
                  %694 = sbr.rel target = $region91
                $region96: #{tpu_custom_call.1} parent=81 // loop_exit
                  _
              $region82: #{tpu_custom_call.1} parent=59 // pred_fallthru
                _
              // Predicated region
              $region97: #{tpu_custom_call.1} parent=59 // pred_check
                _
              $region98: #{tpu_custom_call.1} parent=59 // pred_check_branch
                %713 = sbr.rel target = $region100
              $region99: #{tpu_custom_call.1} parent=59 // pred_region
                _
              $region100: #{tpu_custom_call.1} parent=59 // pred_fallthru
                _
            $region60: #{tpu_custom_call.1} parent=55 // pred_fallthru
              _
            // Predicated region
            $region61: #{tpu_custom_call.1} parent=55 // pred_check
              _
            $region62: #{tpu_custom_call.1} parent=55 // pred_check_branch
              %616 = sbr.rel target = $region64
            $region63: #{tpu_custom_call.1} parent=55 // pred_region
              %s618 = sshrl.u32 %s605, 1
              // While loop
              $region65: #{tpu_custom_call.1} parent=63 // loop_pre_header
                _
              $region66: #{tpu_custom_call.1} parent=63 // loop_header
                %s620 = sphi 0, %s622
                %p621 = scmp.ge.s32.totalorder %s620, %s618
                %s625 = sphi 0, %s634
                %s626 = sphi %s598, %s637
                %s627 = sphi %s609, %s638
              $region67: #{tpu_custom_call.1} parent=63 // loop_header_branch
                %624 = sbr.rel (%p621) target = $region71
              $region68: #{tpu_custom_call.1} parent=63 // loop_body
                %v628 = vld [vmem:[%s626] sm:$0xff]
                %629 = vst [vmem:[%s627] sm:$0xff] %v628
                %v630 = vld [vmem:[%s626 + $0x8] sm:$0xff]
                %631 = vst [vmem:[%s627 + $0x8] sm:$0xff] %v630
                %s632 = sadd.s32 1, %s625
                %p633 = scmp.ge.s32.totalorder %s632, %s618
                %s634 = scalar_select %p633, 0, %s632
                %s635 = smul.u32 %s634, 16
                %s636 = smul.u32 %s634, 16
                %s637 = scalar_lea.vmem %s598, %s635 [#allocation2]
                %s638 = scalar_lea.vmem %s609, %s636
              $region69: #{tpu_custom_call.1} parent=63 // loop_footer
                %s622 = sadd.s32 %s620, 1
              $region70: #{tpu_custom_call.1} parent=63 // loop_footer_branch
                %619 = sbr.rel target = $region66
              $region71: #{tpu_custom_call.1} parent=63 // loop_exit
                _
              %s639 = sshrl.u32 %s605, 1
              %s640 = sand.u32 %s605, 1
              %s641 = smul.u32 %s639, 2
              %s642 = smul.u32 8, %s641
              %s643 = scalar_lea.vmem %s598, %s642 [#allocation2]
              %s644 = smul.u32 8, %s641
              %s645 = scalar_lea.vmem %s609, %s644
              // While loop
              $region72: #{tpu_custom_call.1} parent=63 // loop_pre_header
                _
              $region73: #{tpu_custom_call.1} parent=63 // loop_header
                %s647 = sphi 0, %s649
                %p648 = scmp.ge.s32.totalorder %s647, %s640
                %s652 = sphi 0, %s659
                %s653 = sphi %s643, %s662
                %s654 = sphi %s645, %s663
              $region74: #{tpu_custom_call.1} parent=63 // loop_header_branch
                %651 = sbr.rel (%p648) target = $region78
              $region75: #{tpu_custom_call.1} parent=63 // loop_body
                %v655 = vld [vmem:[%s653] sm:$0xff]
                %656 = vst [vmem:[%s654] sm:$0xff] %v655
                %s657 = sadd.s32 1, %s652
                %p658 = scmp.ge.s32.totalorder %s657, %s640
                %s659 = scalar_select %p658, 0, %s657
                %s660 = smul.u32 %s659, 8
                %s661 = smul.u32 %s659, 8
                %s662 = scalar_lea.vmem %s643, %s660 [#allocation2]
                %s663 = scalar_lea.vmem %s645, %s661
              $region76: #{tpu_custom_call.1} parent=63 // loop_footer
                %s649 = sadd.s32 %s647, 1
              $region77: #{tpu_custom_call.1} parent=63 // loop_footer_branch
                %646 = sbr.rel target = $region73
              $region78: #{tpu_custom_call.1} parent=63 // loop_exit
                _
            $region64: #{tpu_custom_call.1} parent=55 // pred_fallthru
              _
          $region56: #{tpu_custom_call.1} parent=51 // pred_fallthru
            _
          %714 = vnop
        $region52: #{tpu_custom_call.1} parent=47 // pred_fallthru
          _
      $region48: #{tpu_custom_call.1} parent=5 // pred_fallthru
        _
      %p715 = scmp.le.s32.totalorder 2, %s13
      // Predicated region
      $region101: #{tpu_custom_call.1} parent=5 // pred_check
        %p716 = pneg %p715
      $region102: #{tpu_custom_call.1} parent=5 // pred_check_branch
        %718 = sbr.rel (%p716) target = $region104
      $region103: #{tpu_custom_call.1} parent=5 // pred_region
        %s719 = ssub.s32 %s13, 2
        // Predicated region
        $region105: #{tpu_custom_call.1} parent=103 // pred_check
          %p720 = pneg %p194
        $region106: #{tpu_custom_call.1} parent=103 // pred_check_branch
          %722 = sbr.rel (%p720) target = $region108
        $region107: #{tpu_custom_call.1} parent=103 // pred_region
          %s723 = sand.u32 %s179, 1
          %s724 = sand.u32 %s179, 1
          %s725 = smul.addr %s724, 16
          %s726 = scalar_lea.vmem [#allocation2], %s725
        $region108: #{tpu_custom_call.1} parent=103 // pred_fallthru
          _
      $region104: #{tpu_custom_call.1} parent=5 // pred_fallthru
        _
    $region6: #{tpu_custom_call.1} parent=1 // loop_footer
      %s17 = sadd.s32 1, %s13
    $region7: #{tpu_custom_call.1} parent=1 // loop_footer_branch
      %12 = sbr.rel target = $region3
    $region8: #{tpu_custom_call.1} parent=1 // loop_exit
      _

</llo_original>
